<compile_context>
chip_gen: v5e
topology: v5e:2x2
jax: 0.10.0
libtpu: 0.0.40
codegen_flags: <defaults>
</compile_context>

<pallas_src>
import functools
import math

import jax
import jax.numpy as jnp
from jax.experimental import pallas as pl
from jax.experimental.pallas import tpu as pltpu


def _se_kernel(x_ref, w1t_ref, b1_ref, w2t_ref, b2_ref, o_ref, *, inv_hw, bb):
    """One batch-block per grid step.

    x_ref:   VMEM (bb, C, HW)  input, spatial flattened onto the lane axis
    w1t_ref: VMEM (C, R)       fc1 weight, pre-transposed (Linear(planes,R).weight.T)
    b1_ref:  VMEM (1, R)       fc1 bias
    w2t_ref: VMEM (R, C)       fc2 weight, pre-transposed (Linear(R,planes).weight.T)
    b2_ref:  VMEM (1, C)       fc2 bias
    o_ref:   VMEM (bb, C, HW)  output
    """
    x = x_ref[...].astype(jnp.float32)            # (bb, C, HW), lane-dense

    # Squeeze: global average + max pool over the spatial (lane) axis.
    y_avg = jnp.sum(x, axis=-1) * inv_hw          # (bb, C)
    y_max = jnp.max(x, axis=-1)                   # (bb, C)

    # Run the shared MLP once on the stacked [avg; max] rows (2*bb, C):
    # one pair of small MXU matmuls instead of two.
    ys = jnp.concatenate([y_avg, y_max], axis=0)  # (2*bb, C)

    w1t = w1t_ref[...]
    b1 = b1_ref[...]
    w2t = w2t_ref[...]
    b2 = b2_ref[...]

    h = jnp.dot(ys, w1t, preferred_element_type=jnp.float32) + b1      # (2*bb, R)
    h = jnp.maximum(h, 0.0)                                            # ReLU
    z_all = jnp.dot(h, w2t, preferred_element_type=jnp.float32) + b2   # (2*bb, C)

    z = z_all[:bb, :] + z_all[bb:, :]             # (bb, C)  fc(avg) + fc(max)
    gate = 1.0 / (1.0 + jnp.exp(-z))              # sigmoid (EUP exp + recip)

    # Excite: per-(batch, channel) scale, broadcast along the lane (spatial) axis.
    o_ref[...] = (x * gate[:, :, None]).astype(o_ref.dtype)


def se_layer(x, fc1_w, fc1_b, fc2_w, fc2_b):
    """x: (B, C, H, W).  fc1_w: (R, C), fc1_b: (R,), fc2_w: (C, R), fc2_b: (C,).

    Returns (B, C, H, W) = x * sigmoid(fc(avg_pool(x)) + fc(max_pool(x))).
    """
    B, C, H, W = x.shape
    R = fc1_w.shape[0]
    HW = H * W

    # Lane-dense layout: flatten spatial onto the last (lane) axis.
    xf = x.reshape(B, C, HW)

    # Pre-transpose FC weights so the kernel does plain y @ W^T dots.
    w1t = jnp.transpose(fc1_w).astype(jnp.float32)      # (C, R)
    w2t = jnp.transpose(fc2_w).astype(jnp.float32)      # (R, C)
    b1r = fc1_b.reshape(1, R).astype(jnp.float32)
    b2r = fc2_b.reshape(1, C).astype(jnp.float32)

    # Fold the whole batch into one grid step when it fits a conservative VMEM
    # budget (double-buffered blocks must fit v5e's 16 MiB default scoped VMEM);
    # otherwise tile uniformly along batch (no padded partial blocks).
    max_block_bytes = 4 * 1024 * 1024
    per_batch_bytes = 2 * C * HW * jnp.dtype(x.dtype).itemsize  # in block + out block
    bb = max(1, min(B, max_block_bytes // max(per_batch_bytes, 1)))
    while B % bb:
        bb -= 1
    grid = (B // bb,)

    kernel = functools.partial(_se_kernel, inv_hw=1.0 / HW, bb=bb)

    out = pl.pallas_call(
        kernel,
        out_shape=jax.ShapeDtypeStruct((B, C, HW), x.dtype),
        grid=grid,
        in_specs=[
            pl.BlockSpec((bb, C, HW), lambda i: (i, 0, 0)),   # x (batch-tiled)
            pl.BlockSpec((C, R), lambda i: (0, 0)),           # fc1 weight^T
            pl.BlockSpec((1, R), lambda i: (0, 0)),           # fc1 bias
            pl.BlockSpec((R, C), lambda i: (0, 0)),           # fc2 weight^T
            pl.BlockSpec((1, C), lambda i: (0, 0)),           # fc2 bias
        ],
        out_specs=pl.BlockSpec((bb, C, HW), lambda i: (i, 0, 0)),
        compiler_params=pltpu.CompilerParams(
            dimension_semantics=("parallel",)),               # batch axis: independent
    )(xf, w1t, b1r, w2t, b2r)
    return out.reshape(B, C, H, W)


def se_layer_ref(x, fc1_w, fc1_b, fc2_w, fc2_b):
    """Pure-JAX reference with identical semantics (for verification)."""
    y1 = jnp.mean(x, axis=(2, 3))                 # AdaptiveAvgPool2d(1)
    y2 = jnp.max(x, axis=(2, 3))                  # AdaptiveMaxPool2d(1)

    def fc(y):
        h = jnp.maximum(y @ fc1_w.T + fc1_b, 0.0)
        return h @ fc2_w.T + fc2_b

    gate = jax.nn.sigmoid(fc(y1) + fc(y2))        # (B, C)
    return x * gate[:, :, None, None]


if __name__ == "__main__":
    # Small shapes consistent with the module: planes = C, reduction = R.
    B, C, H, W, R = 2, 4, 16, 16, 32

    key = jax.random.PRNGKey(0)
    ks = jax.random.split(key, 5)
    x = jax.random.normal(ks[0], (B, C, H, W), jnp.float32)

    # Deterministic synthetic parameters (shapes from the module's __init__).
    fc1_w = jax.random.normal(ks[1], (R, C), jnp.float32) * (1.0 / math.sqrt(C))  # Linear(planes, R)
    fc1_b = 0.1 * jax.random.normal(ks[2], (R,), jnp.float32)
    fc2_w = jax.random.normal(ks[3], (C, R), jnp.float32) * (1.0 / math.sqrt(R))  # Linear(R, planes)
    fc2_b = 0.1 * jax.random.normal(ks[4], (C,), jnp.float32)

    out = se_layer(x, fc1_w, fc1_b, fc2_w, fc2_b)
    out = jax.block_until_ready(out)

    ref = se_layer_ref(x, fc1_w, fc1_b, fc2_w, fc2_b)
    assert out.shape == (B, C, H, W), out.shape
    assert jnp.allclose(out, ref, rtol=1e-4, atol=1e-5), float(jnp.max(jnp.abs(out - ref)))

    print("KERNEL_OK")
</pallas_src>

<mosaic_0001>
module attributes {stable_mosaic.version = 11 : i64} {
  func.func @_se_kernel(%arg0: i32, %arg1: memref<2x4x256xf32, #tpu.memory_space<vmem>>, %arg2: memref<4x32xf32, #tpu.memory_space<vmem>>, %arg3: memref<1x32xf32, #tpu.memory_space<vmem>>, %arg4: memref<32x4xf32, #tpu.memory_space<vmem>>, %arg5: memref<1x4xf32, #tpu.memory_space<vmem>>, %arg6: memref<2x4x256xf32, #tpu.memory_space<vmem>>) attributes {dimension_semantics = [#tpu.dimension_semantics<parallel>], iteration_bounds = array<i64: 1>, scalar_prefetch = 0 : i64, scratch_operands = 0 : i64, tpu.core_type = #tpu.core_type<tc>, window_params = [{transform_indices = @transform_0, window_bounds = array<i64: 2, 4, 256>}, {pipeline_mode = #tpu.pipeline_mode<synchronous>, transform_indices = @transform_1, window_bounds = array<i64: 4, 32>}, {pipeline_mode = #tpu.pipeline_mode<synchronous>, transform_indices = @transform_2, window_bounds = array<i64: 1, 32>}, {pipeline_mode = #tpu.pipeline_mode<synchronous>, transform_indices = @transform_3, window_bounds = array<i64: 32, 4>}, {pipeline_mode = #tpu.pipeline_mode<synchronous>, transform_indices = @transform_4, window_bounds = array<i64: 1, 4>}, {transform_indices = @transform_5, window_bounds = array<i64: 2, 4, 256>}]} {
    %c0 = arith.constant 0 : index
    %c0_0 = arith.constant 0 : index
    %c0_1 = arith.constant 0 : index
    %0 = vector.load %arg1[%c0, %c0_0, %c0_1] : memref<2x4x256xf32, #tpu.memory_space<vmem>>, vector<2x4x256xf32>
    %cst = arith.constant dense<0.000000e+00> : vector<2x4xf32>
    %1 = vector.multi_reduction <add>, %0, %cst [2] : vector<2x4x256xf32> to vector<2x4xf32>
    %cst_2 = arith.constant 3.906250e-03 : f32
    %2 = vector.broadcast %cst_2 : f32 to vector<2x4xf32>
    %3 = arith.mulf %1, %2 : vector<2x4xf32>
    %cst_3 = arith.constant dense<0xFF800000> : vector<2x4xf32>
    %4 = vector.multi_reduction <maximumf>, %0, %cst_3 [2] : vector<2x4x256xf32> to vector<2x4xf32>
    %5 = tpu.concatenate %3, %4 in 0 : vector<2x4xf32>, vector<2x4xf32> -> vector<4x4xf32>
    %c0_4 = arith.constant 0 : index
    %c0_5 = arith.constant 0 : index
    %6 = vector.load %arg2[%c0_4, %c0_5] : memref<4x32xf32, #tpu.memory_space<vmem>>, vector<4x32xf32>
    %c0_6 = arith.constant 0 : index
    %c0_7 = arith.constant 0 : index
    %7 = vector.load %arg3[%c0_6, %c0_7] : memref<1x32xf32, #tpu.memory_space<vmem>>, vector<1x32xf32>
    %c0_8 = arith.constant 0 : index
    %c0_9 = arith.constant 0 : index
    %8 = vector.load %arg4[%c0_8, %c0_9] : memref<32x4xf32, #tpu.memory_space<vmem>>, vector<32x4xf32>
    %c0_10 = arith.constant 0 : index
    %c0_11 = arith.constant 0 : index
    %9 = vector.load %arg5[%c0_10, %c0_11] : memref<1x4xf32, #tpu.memory_space<vmem>>, vector<1x4xf32>
    %cst_12 = arith.constant dense<0.000000e+00> : vector<4x32xf32>
    %10 = tpu.matmul %5, %6, %cst_12 {dimension_numbers = #tpu.dot_dimension_numbers<[1], [0], [0], [1], [0, 0, 1, 1], [], []>} : vector<4x4xf32>, vector<4x32xf32>, vector<4x32xf32> -> vector<4x32xf32>
    %11 = vector.broadcast %7 : vector<1x32xf32> to vector<4x32xf32>
    %12 = arith.addf %10, %11 : vector<4x32xf32>
    %cst_13 = arith.constant 0.000000e+00 : f32
    %13 = vector.broadcast %cst_13 : f32 to vector<4x32xf32>
    %14 = arith.maximumf %12, %13 : vector<4x32xf32>
    %cst_14 = arith.constant dense<0.000000e+00> : vector<4x4xf32>
    %15 = tpu.matmul %14, %8, %cst_14 {dimension_numbers = #tpu.dot_dimension_numbers<[1], [0], [0], [1], [0, 0, 1, 1], [], []>} : vector<4x32xf32>, vector<32x4xf32>, vector<4x4xf32> -> vector<4x4xf32>
    %16 = vector.broadcast %9 : vector<1x4xf32> to vector<4x4xf32>
    %17 = arith.addf %15, %16 : vector<4x4xf32>
    %18 = vector.extract_strided_slice %17 {offsets = [0, 0], sizes = [2, 4], strides = [1, 1]} : vector<4x4xf32> to vector<2x4xf32>
    %19 = vector.extract_strided_slice %17 {offsets = [2, 0], sizes = [2, 4], strides = [1, 1]} : vector<4x4xf32> to vector<2x4xf32>
    %20 = arith.addf %18, %19 : vector<2x4xf32>
    %cst_15 = arith.constant 0.000000e+00 : f32
    %21 = vector.broadcast %cst_15 : f32 to vector<2x4xf32>
    %22 = arith.subf %21, %20 : vector<2x4xf32>
    %23 = math.exp %22 : vector<2x4xf32>
    %cst_16 = arith.constant 1.000000e+00 : f32
    %24 = vector.broadcast %cst_16 : f32 to vector<2x4xf32>
    %25 = arith.addf %24, %23 : vector<2x4xf32>
    %cst_17 = arith.constant 1.000000e+00 : f32
    %26 = vector.broadcast %cst_17 : f32 to vector<2x4xf32>
    %27 = arith.divf %26, %25 : vector<2x4xf32>
    %28 = vector.shape_cast %27 : vector<2x4xf32> to vector<2x4x1xf32>
    %29 = vector.broadcast %28 : vector<2x4x1xf32> to vector<2x4x256xf32>
    %30 = arith.mulf %0, %29 : vector<2x4x256xf32>
    %c0_18 = arith.constant 0 : index
    %c0_19 = arith.constant 0 : index
    %c0_20 = arith.constant 0 : index
    %31 = vector.load %arg6[%c0_18, %c0_19, %c0_20] : memref<2x4x256xf32, #tpu.memory_space<vmem>>, vector<2x4x256xf32>
    tpu.vector_store %arg6[%c0_18, %c0_19, %c0_20], %30 {strides = array<i32>} : memref<2x4x256xf32, #tpu.memory_space<vmem>>, vector<2x4x256xf32>,
    return
  }
  func.func @transform_0(%arg0: i32) -> (i32, i32, i32) {
    %c0_i32 = arith.constant 0 : i32
    %c0_i32_0 = arith.constant 0 : i32
    %c0_i32_1 = arith.constant 0 : i32
    return %arg0, %c0_i32, %c0_i32_0 : i32, i32, i32
  }
  func.func @transform_1(%arg0: i32) -> (i32, i32) {
    %c0_i32 = arith.constant 0 : i32
    %c0_i32_0 = arith.constant 0 : i32
    %c0_i32_1 = arith.constant 0 : i32
    return %c0_i32, %c0_i32_0 : i32, i32
  }
  func.func @transform_2(%arg0: i32) -> (i32, i32) {
    %c0_i32 = arith.constant 0 : i32
    %c0_i32_0 = arith.constant 0 : i32
    %c0_i32_1 = arith.constant 0 : i32
    return %c0_i32, %c0_i32_0 : i32, i32
  }
  func.func @transform_3(%arg0: i32) -> (i32, i32) {
    %c0_i32 = arith.constant 0 : i32
    %c0_i32_0 = arith.constant 0 : i32
    %c0_i32_1 = arith.constant 0 : i32
    return %c0_i32, %c0_i32_0 : i32, i32
  }
  func.func @transform_4(%arg0: i32) -> (i32, i32) {
    %c0_i32 = arith.constant 0 : i32
    %c0_i32_0 = arith.constant 0 : i32
    %c0_i32_1 = arith.constant 0 : i32
    return %c0_i32, %c0_i32_0 : i32, i32
  }
  func.func @transform_5(%arg0: i32) -> (i32, i32, i32) {
    %c0_i32 = arith.constant 0 : i32
    %c0_i32_0 = arith.constant 0 : i32
    %c0_i32_1 = arith.constant 0 : i32
    return %arg0, %c0_i32, %c0_i32_0 : i32, i32, i32
  }
}

</mosaic_0001>

<llo_original>
// kernel: tpu_custom_call.1
$region0: #{tpu_custom_call.1}
  #allocation0 [shape = 'u32[]', space=smem, size = 0x4, offset = 0x4, fixed_abs, tag = 'smem constant byte address 0x4 - core index']
  #allocation1 [shape = 'u32[72,128]{1,0:T(1,128)}', space=vmem, size = 0x9000, scoped, tag = 'internal scratch']
  %s0 = inlined_call_operand.vmem [shape: f32[2,4,256], index: 0, kind: input, shape index: {}]
  %s1 = inlined_call_operand.vmem [shape: f32[4,32], index: 1, kind: input, shape index: {}]
  %s2 = inlined_call_operand.vmem [shape: f32[1,32], index: 2, kind: input, shape index: {}]
  %s3 = inlined_call_operand.vmem [shape: f32[32,4], index: 3, kind: input, shape index: {}]
  %s4 = inlined_call_operand.vmem [shape: f32[1,4], index: 4, kind: input, shape index: {}]
  %s5 = inlined_call_operand.hbm [shape: f32[2,4,256], index: 5, kind: output, shape index: {}]
  %s6 = sld [smem:[#allocation0]]
  $region30: #{tpu_custom_call.1} parent=0
    _
  %s8 = ssub.s32 1, %s6
  %s9 = scalar_select 0, %s8, %s6
  $region1: #{tpu_custom_call.1} parent=0
    #allocation2 [shape = 'u8[8192]{0}', space=vmem, size = 0x2000, scoped, tag = 'output window, operand 0, single buffered']
    #allocation3 [shape = 's32[1]{0}', space=sflag, size = 0x4, scoped, tag = 'scoped memory for tpu_custom_call.1']
    %10 = vsyncpa [#allocation3], 0
    // Predicated region
    $region2: #{tpu_custom_call.1} parent=1 // pred_check
      _
    $region3: #{tpu_custom_call.1} parent=1 // pred_check_branch
      %12 = sbr.rel (0) target = $region5
    $region4: #{tpu_custom_call.1} parent=1 // pred_region
      _
    $region5: #{tpu_custom_call.1} parent=1 // pred_fallthru
      _
    // Predicated region
    $region6: #{tpu_custom_call.1} parent=1 // pred_check
      _
    $region7: #{tpu_custom_call.1} parent=1 // pred_check_branch
      %14 = sbr.rel (0) target = $region9
    $region8: #{tpu_custom_call.1} parent=1 // pred_region
      _
    $region9: #{tpu_custom_call.1} parent=1 // pred_fallthru
      _
    // Predicated region
    $region10: #{tpu_custom_call.1} parent=1 // pred_check
      _
    $region11: #{tpu_custom_call.1} parent=1 // pred_check_branch
      %16 = sbr.rel (0) target = $region13
    $region12: #{tpu_custom_call.1} parent=1 // pred_region
      _
    $region13: #{tpu_custom_call.1} parent=1 // pred_fallthru
      _
    // Predicated region
    $region14: #{tpu_custom_call.1} parent=1 // pred_check
      _
    $region15: #{tpu_custom_call.1} parent=1 // pred_check_branch
      %18 = sbr.rel (0) target = $region17
    $region16: #{tpu_custom_call.1} parent=1 // pred_region
      _
    $region17: #{tpu_custom_call.1} parent=1 // pred_fallthru
      _
    // Predicated region
    $region18: #{tpu_custom_call.1} parent=1 // pred_check
      _
    $region19: #{tpu_custom_call.1} parent=1 // pred_check_branch
      %20 = sbr.rel (0) target = $region21
    $region20: #{tpu_custom_call.1} parent=1 // pred_region
      _
    $region21: #{tpu_custom_call.1} parent=1 // pred_fallthru
      _
    %v21 = vld [vmem:[%s0] sm:$0xff]
    %v22 = vld [vmem:[%s0 + $0x8] sm:$0xff]
    %25 = vst [vmem:[#allocation1] ss:$2 sm:$0xff] %v21
    %v26 = vld.sshfl [vmem:[#allocation1] sm:$0xff pattern:$0x75316420]
    %v27 = vld.sshfl [vmem:[#allocation1 + $0x8] sm:$0xff pattern:$0x75316420]
    %s28 = scalar_lea.vmem [#allocation1], 16
    %29 = vst [vmem:[%s28] ss:$2 sm:$0xff] %v22
    %v30 = vld.sshfl [vmem:[#allocation1 + $0x10] sm:$0xff pattern:$0x75316420]
    %v31 = vld.sshfl [vmem:[#allocation1 + $0x18] sm:$0xff pattern:$0x75316420]
    %vm36 = vcmask 1043456
    %v37 = vsel %vm36, %v26, 0.0
    %v38 = vsel %vm36, %v27, 0.0
    %v39 = vadd.f32 %v37, %v38
    %40 = vadd.xlane.f32.xlu0 %v39
    %v41 = vpop.xlane.xlu0 %40
    %v42 = vsel %vm36, %v30, 0.0
    %v43 = vsel %vm36, %v31, 0.0
    %v44 = vadd.f32 %v42, %v43
    %45 = vadd.xlane.f32.xlu0 %v44
    %v46 = vpop.xlane.xlu0 %45
    %v47 = vmul.f32 %v41, 0.00390625
    %v48 = vmul.f32 %v46, 0.00390625
    %49 = vst [vmem:[#allocation1] ss:$2 sm:$0xff] %v21
    %v50 = vld.sshfl [vmem:[#allocation1] sm:$0xff pattern:$0x75316420]
    %v51 = vld.sshfl [vmem:[#allocation1 + $0x8] sm:$0xff pattern:$0x75316420]
    %s52 = scalar_lea.vmem [#allocation1], 16
    %53 = vst [vmem:[%s52] ss:$2 sm:$0xff] %v22
    %v54 = vld.sshfl [vmem:[#allocation1 + $0x10] sm:$0xff pattern:$0x75316420]
    %v55 = vld.sshfl [vmem:[#allocation1 + $0x18] sm:$0xff pattern:$0x75316420]
    %v60 = vsel %vm36, %v50, -inf
    %v61 = vsel %vm36, %v51, -inf
    %v62 = vmax.f32 %v60, %v61
    %63 = vmax.xlane.f32.xlu0 %v62
    %v64 = vpop.xlane.xlu0 %63
    %v65 = vsel %vm36, %v54, -inf
    %v66 = vsel %vm36, %v55, -inf
    %v67 = vmax.f32 %v65, %v66
    %68 = vmax.xlane.f32.xlu0 %v67
    %v69 = vpop.xlane.xlu0 %68
    %v72 = vlaneseq
    %v73 = vand.u32 %v72, 127
    %v74 = vperm.slane %v47, %v73
    %v75 = vperm.slane %v48, %v73
    %vm76 = vcmask 1041409
    %v77 = vsel %vm76, %v75, %v74
    %v81 = vperm.slane %v64, %v73
    %v82 = vperm.slane %v69, %v73
    %vm83 = vcmask 1043459
    %v84 = vsel %vm83, %v82, %v81
    %vm86 = vcmask 1041408
    %v87 = vsel %vm86, %v77, %v84
    %v88 = vld [vmem:[%s1] sm:$0xf]
    %v89 = vld [vmem:[%s2] sm:$0x1]
    %v90 = vld [vmem:[%s3] sm:$0xff]
    %v91 = vld [vmem:[%s3 + $0x8] sm:$0xff]
    %v92 = vld [vmem:[%s3 + $0x10] sm:$0xff]
    %v93 = vld [vmem:[%s3 + $0x18] sm:$0xff]
    %v94 = vld [vmem:[%s4] sm:$0x1]
    %v96 = vperm.slane %v89, 0
    %vm98 = vcmask 31744
    %v100 = vsel %vm98, %v87, 0
    %v103 = vsel %vm36, %v88, 0
    %105 = vmatpush.msra.mxu0 0.0
    %106 = vmatpush.msra.mxu0 0.0
    %107 = vmatpush.msra.mxu0 0.0
    %108 = vmatpush.msra.mxu0 0.0
    %109 = vmatpush.msra.mxu0 0.0
    %110 = vmatpush.msra.mxu0 0.0
    %111 = vmatpush.msra.mxu0 0.0
    %112 = vmatpush.msra.mxu0 0.0
    %113 = vmatpush.msra.mxu0 0.0
    %114 = vmatpush.msra.mxu0 0.0
    %115 = vmatpush.msra.mxu0 0.0
    %116 = vmatpush.msra.mxu0 0.0
    %117 = vmatpush.msra.mxu0 0.0
    %118 = vmatpush.msra.mxu0 0.0
    %119 = vmatpush.msra.mxu0 0.0
    %120 = vmatpush.msra.mxu0 %v103
    %121 = vmatmul.f32.gmra.mxu0 %v100
    %v122 = vpop.f32.mrf.mxu0
    %v123 = vadd.f32 %v96, %v122
    %124 = vdwg.mxu0
    %v125 = vmax.f32 %v123, 0.0
    %v127 = vperm.slane %v94, 0
    %vm129 = vcmask 261120
    %v131 = vsel %vm129, %v125, 0
    %133 = vmatpush.msra.mxu0 0.0
    %134 = vmatpush.msra.mxu0 0.0
    %135 = vmatpush.msra.mxu0 0.0
    %136 = vmatpush.msra.mxu0 0.0
    %137 = vmatpush.msra.mxu0 0.0
    %138 = vmatpush.msra.mxu0 0.0
    %139 = vmatpush.msra.mxu0 0.0
    %140 = vmatpush.msra.mxu0 0.0
    %141 = vmatpush.msra.mxu0 0.0
    %142 = vmatpush.msra.mxu0 0.0
    %143 = vmatpush.msra.mxu0 0.0
    %144 = vmatpush.msra.mxu0 0.0
    %145 = vmatpush.msra.mxu0 %v93
    %146 = vmatpush.msra.mxu0 %v92
    %147 = vmatpush.msra.mxu0 %v91
    %148 = vmatpush.msra.mxu0 %v90
    %149 = vmatmul.f32.gmra.mxu0 %v131
    %v150 = vpop.f32.mrf.mxu0
    %v151 = vadd.f32 %v127, %v150
    %152 = vdwg.mxu0
    %v154 = vrot.slane %v151, 2
    %v156 = vadd.f32 %v151, %v154
    %v157 = vsub.f32 0.0, %v156
    %v158 = vmul.f32 %v157, 1.442695
    %v159 = vpow.pop %v158
    %v160 = vadd.f32 %v159, 1.0
    %v161 = vrcp.pop %v160
    %v162 = vmul.f32 %v160, %v161
    %v163 = vsub.f32 1.0, %v162
    %v164 = vmul.f32 %v161, %v163
    %v165 = vadd.f32 %v161, %v164
    %vm166 = vweird.f32 %v160
    %vm167 = vweird.f32 %v161
    %vm168 = vmor %vm166, %vm167
    %v169 = vsel %vm168, %v161, %v165
    %v170 = vand.u32 2147483647, %v160
    %vm171 = vcmp.eq.f32.partialorder %v170, 8.507059e+37
    %v172 = vand.u32 %v160, 2147483648
    %v173 = vor.u32 1.1754944e-38, %v172
    %v174 = vsel %vm171, %v173, %v169
    %v175 = vmul.f32 1.0, %v174
    %v176 = vperm.slane %v175, 0
    %v177 = vlaneseq
    %v178 = vshrl.u32 %v177, 7
    %180 = vset.pattern.permute.xlu0 %v178
    %181 = vperm.xlu0 %180, %v176
    %v182 = vpop.permute.xlu0 %181
    %v183 = vperm.slane %v175, 1
    %v184 = vlaneseq
    %v185 = vshrl.u32 %v184, 7
    %187 = vset.pattern.permute.xlu0 %v185
    %188 = vperm.xlu0 %187, %v183
    %v189 = vpop.permute.xlu0 %188
    %v193 = vunpack.c.l.s4 839922192
    %v194 = vunpack.c.0.s8 %v193
    %v195 = vperm.slane %v182, %v194
    %v197 = vunpack.c.l.s4 839922192
    %v198 = vunpack.c.0.s8 %v197
    %v199 = vperm.slane %v189, %v198
    %v202 = vmul.f32 %v21, %v195
    %v203 = vmul.f32 %v22, %v199
    %204 = vst [vmem:[#allocation2] sm:$0xff] %v202
    %205 = vst [vmem:[#allocation2 + $0x8] sm:$0xff] %v203
    // Predicated region
    $region22: #{tpu_custom_call.1} parent=1 // pred_check
      _
    $region23: #{tpu_custom_call.1} parent=1 // pred_check_branch
      %207 = sbr.rel (0) target = $region25
    $region24: #{tpu_custom_call.1} parent=1 // pred_region
      %209 = vsyncadd [#allocation3], 0
      %s210 = sshll.u32 [#allocation2], 4
      %s211 = int_to_ptr.vmem [resolvable:$true] %s210
      %s212 = sshll.u32 %s5, 4
      %s213 = int_to_ptr.hbm [resolvable:$true] %s212
      %218 = dma.vmem_to_hbm [thread:$0]  %s211, 256, %s213, [#allocation3], 128, 128, 8
    $region25: #{tpu_custom_call.1} parent=1 // pred_fallthru
      _
    // Predicated region
    $region26: #{tpu_custom_call.1} parent=1 // pred_check
      _
    $region27: #{tpu_custom_call.1} parent=1 // pred_check_branch
      %220 = sbr.rel (0) target = $region29
    $region28: #{tpu_custom_call.1} parent=1 // pred_region
      %222 = dma.done [#allocation3], 256
    $region29: #{tpu_custom_call.1} parent=1 // pred_fallthru
      _
    %223 = vsyncpa [#allocation3], 1

</llo_original>
